<compile_context>
chip_gen: v5e
topology: v5e:2x2
jax: 0.10.0
libtpu: 0.0.40
codegen_flags: <defaults>
</compile_context>

<pallas_src>
import jax
import jax.numpy as jnp
from jax.experimental import pallas as pl
from jax.experimental.pallas import tpu as pltpu


def _token_conv_matmul_kernel(x_ref, w_ref, o_ref):
    # x_ref: (tm, 3*C)   w_ref: (3*C, td)   o_ref: (tm, td)
    o_ref[...] = jnp.dot(
        x_ref[...], w_ref[...], preferred_element_type=jnp.float32
    ).astype(o_ref.dtype)


def token_embedding(x, weight, *, block_m=1024, block_d=2048,
                    compute_dtype=None, out_dtype=None):
    """x: (B, L, C_in); weight: (3, C_in, d_model) -> (B, L, d_model).

    Matches nn.Conv1d(C_in, d_model, kernel_size=3, padding=1,
    padding_mode='circular', bias=False) applied along L.
    `out_dtype` controls the HBM output dtype (bf16 ~2x on this write-bound
    op); accumulation is always f32.
    """
    B, L, C = x.shape
    K, Cw, D = weight.shape
    assert K == 3 and Cw == C

    out_dtype = x.dtype if out_dtype is None else out_dtype

    # --- wrapper-side halo + tap stacking (circular semantics live here) ----
    # TODO(synk): for large C_in, build the shifted taps in-kernel (resident x
    # + slicing) instead of materializing a 3x-wide x_cat in HBM; irrelevant
    # at C_in=4.
    x_prev = jnp.roll(x, 1, axis=1)    # x_prev[:, t] = x[:, (t-1) mod L]
    x_next = jnp.roll(x, -1, axis=1)   # x_next[:, t] = x[:, (t+1) mod L]
    x_cat = jnp.concatenate([x_prev, x, x_next], axis=-1).reshape(B * L, 3 * C)
    w_flat = weight.reshape(3 * C, D)  # rows: [W0; W1; W2] -> matches x_cat order

    if compute_dtype is not None:      # input-side dtype (negligible traffic)
        x_cat = x_cat.astype(compute_dtype)
        w_flat = w_flat.astype(compute_dtype)

    # --- tiling ------------------------------------------------------------
    M = B * L
    tm = block_m if M > block_m else M   # block_m multiple of 8; else full dim
    td = block_d if D > block_d else D   # block_d multiple of 128; else full dim

    # Megacore guard (v7x: 2 TCs): avoid a degenerate (1, 1) grid by splitting
    # the row axis into >=2 blocks of multiple-of-8 rows when possible.
    if pl.cdiv(M, tm) * pl.cdiv(D, td) < 2 and M >= 16:
        tm = ((M // 2 + 7) // 8) * 8

    # d_model blocks are the SLOW grid axis so the (tiny) weight block index
    # is unchanged across the inner row axis and is not re-streamed per step.
    grid = (pl.cdiv(D, td), pl.cdiv(M, tm))

    in_bytes = jnp.dtype(x_cat.dtype).itemsize
    w_bytes = jnp.dtype(w_flat.dtype).itemsize
    out_bytes = jnp.dtype(out_dtype).itemsize

    # Double-buffered per-step VMEM footprint + headroom; cap under v7x's
    # 64 MiB physical VMEM (also fine vs v5e/v6e 128 MiB physical).
    vmem_needed = 2 * (tm * 3 * C * in_bytes
                       + 3 * C * td * w_bytes
                       + tm * td * out_bytes)
    vmem_limit = int(min(max(vmem_needed + (4 << 20), 24 << 20), 48 << 20))

    cost = pl.CostEstimate(
        flops=2 * M * 3 * C * D,
        transcendentals=0,
        bytes_accessed=(M * 3 * C * in_bytes
                        + 3 * C * D * w_bytes
                        + M * D * out_bytes),
    )

    out2d = pl.pallas_call(
        _token_conv_matmul_kernel,
        out_shape=jax.ShapeDtypeStruct((M, D), out_dtype),
        grid_spec=pltpu.PrefetchScalarGridSpec(
            num_scalar_prefetch=0,
            grid=grid,
            in_specs=[
                pl.BlockSpec((tm, 3 * C), lambda j, i: (i, 0)),
                pl.BlockSpec((3 * C, td), lambda j, i: (0, j)),
            ],
            out_specs=pl.BlockSpec((tm, td), lambda j, i: (i, j)),
        ),
        compiler_params=pltpu.CompilerParams(
            dimension_semantics=("parallel", "parallel"),
            vmem_limit_bytes=vmem_limit),
        cost_estimate=cost,
    )(x_cat, w_flat)

    return out2d.reshape(B, L, D)


def reference(x, weight):
    # Pure-JAX reference of the circular conv (correctness check only).
    x_prev = jnp.roll(x, 1, axis=1)
    x_next = jnp.roll(x, -1, axis=1)
    return (jnp.einsum("blc,cd->bld", x_prev, weight[0])
            + jnp.einsum("blc,cd->bld", x, weight[1])
            + jnp.einsum("blc,cd->bld", x_next, weight[2]))


def _make_weight(key, c_in, d_model, dtype=jnp.float32):
    # Kaiming-normal (fan_in, leaky_relu a=0 -> gain=sqrt(2)); fan_in = c_in*K.
    fan_in = c_in * 3
    std = (2.0 / fan_in) ** 0.5
    # PyTorch conv weight is (d_model, c_in, 3); store as (3, c_in, d_model).
    w_torch_layout = std * jax.random.normal(key, (d_model, c_in, 3), dtype=dtype)
    return jnp.transpose(w_torch_layout, (2, 1, 0))


if __name__ == "__main__":
    key = jax.random.PRNGKey(0)

    # ---- Test 1: module-consistent small shapes, f32 output ---------------
    B, L, C_IN, D_MODEL = 2, 16, 4, 128
    kx, kw, key = jax.random.split(key, 3)
    x = jax.random.normal(kx, (B, L, C_IN), dtype=jnp.float32)
    weight = _make_weight(kw, C_IN, D_MODEL)

    out = jax.block_until_ready(token_embedding(x, weight))
    ref = reference(x, weight)
    assert out.shape == (B, L, D_MODEL)
    err = float(jnp.max(jnp.abs(out - ref)))
    assert jnp.allclose(out, ref, atol=1e-3, rtol=1e-3), f"f32 max abs err {err}"

    # ---- Test 2: multi-block grid, partial last blocks, bf16 output -------
    B2, L2, C2, D2 = 2, 44, 4, 384          # M=88 (partial rows), D=384 (partial lanes)
    kx2, kw2, key = jax.random.split(key, 3)
    x2 = jax.random.normal(kx2, (B2, L2, C2), dtype=jnp.float32)
    weight2 = _make_weight(kw2, C2, D2)

    out2 = jax.block_until_ready(
        token_embedding(x2, weight2, block_m=32, block_d=256,
                        out_dtype=jnp.bfloat16))
    ref2 = reference(x2, weight2)
    assert out2.shape == (B2, L2, D2) and out2.dtype == jnp.bfloat16
    err2 = float(jnp.max(jnp.abs(out2.astype(jnp.float32) - ref2)))
    assert jnp.allclose(out2.astype(jnp.float32), ref2, atol=5e-2, rtol=5e-2), \
        f"bf16 max abs err {err2}"

    print("KERNEL_OK")
</pallas_src>

<mosaic_0001>
module attributes {stable_mosaic.version = 11 : i64} {
  func.func @_token_conv_matmul_kernel(%arg0: i32, %arg1: i32, %arg2: memref<16x12xf32, #tpu.memory_space<vmem>>, %arg3: memref<12x128xf32, #tpu.memory_space<vmem>>, %arg4: memref<16x128xf32, #tpu.memory_space<vmem>>) attributes {dimension_semantics = [#tpu.dimension_semantics<parallel>, #tpu.dimension_semantics<parallel>], iteration_bounds = array<i64: 1, 2>, scalar_prefetch = 0 : i64, scratch_operands = 0 : i64, tpu.core_type = #tpu.core_type<tc>, window_params = [{transform_indices = @transform_0, window_bounds = array<i64: 16, 12>}, {transform_indices = @transform_1, window_bounds = array<i64: 12, 128>}, {transform_indices = @transform_2, window_bounds = array<i64: 16, 128>}]} {
    %c0 = arith.constant 0 : index
    %c0_0 = arith.constant 0 : index
    %0 = vector.load %arg2[%c0, %c0_0] : memref<16x12xf32, #tpu.memory_space<vmem>>, vector<16x12xf32>
    %c0_1 = arith.constant 0 : index
    %c0_2 = arith.constant 0 : index
    %1 = vector.load %arg3[%c0_1, %c0_2] : memref<12x128xf32, #tpu.memory_space<vmem>>, vector<12x128xf32>
    %cst = arith.constant dense<0.000000e+00> : vector<16x128xf32>
    %2 = tpu.matmul %0, %1, %cst {dimension_numbers = #tpu.dot_dimension_numbers<[1], [0], [0], [1], [0, 0, 1, 1], [], []>} : vector<16x12xf32>, vector<12x128xf32>, vector<16x128xf32> -> vector<16x128xf32>
    %c0_3 = arith.constant 0 : index
    %c0_4 = arith.constant 0 : index
    %3 = vector.load %arg4[%c0_3, %c0_4] : memref<16x128xf32, #tpu.memory_space<vmem>>, vector<16x128xf32>
    tpu.vector_store %arg4[%c0_3, %c0_4], %2 {strides = array<i32>} : memref<16x128xf32, #tpu.memory_space<vmem>>, vector<16x128xf32>,
    return
  }
  func.func @transform_0(%arg0: i32, %arg1: i32) -> (i32, i32) {
    %c0_i32 = arith.constant 0 : i32
    %c0_i32_0 = arith.constant 0 : i32
    return %arg1, %c0_i32 : i32, i32
  }
  func.func @transform_1(%arg0: i32, %arg1: i32) -> (i32, i32) {
    %c0_i32 = arith.constant 0 : i32
    %c0_i32_0 = arith.constant 0 : i32
    return %c0_i32, %arg0 : i32, i32
  }
  func.func @transform_2(%arg0: i32, %arg1: i32) -> (i32, i32) {
    %c0_i32 = arith.constant 0 : i32
    return %arg1, %arg0 : i32, i32
  }
}

</mosaic_0001>

<llo_original>
// kernel: tpu_custom_call.1
$region0: #{tpu_custom_call.1}
  #allocation0 [shape = 'u32[]', space=smem, size = 0x4, offset = 0x4, fixed_abs, tag = 'smem constant byte address 0x4 - core index']
  #allocation1 [shape = 'u32[72,128]{1,0:T(1,128)}', space=vmem, size = 0x9000, scoped, tag = 'internal scratch']
  %s0 = inlined_call_operand.vmem [shape: f32[32,12], index: 0, kind: input, shape index: {}]
  %s1 = inlined_call_operand.vmem [shape: f32[12,128], index: 1, kind: input, shape index: {}]
  %s2 = inlined_call_operand.hbm [shape: f32[32,128], index: 2, kind: output, shape index: {}]
  %s3 = sld [smem:[#allocation0]]
  $region41: #{tpu_custom_call.1} parent=0
    _
  %s5 = ssub.s32 1, %s3
  %s6 = scalar_select 0, %s5, %s3
  $region1: #{tpu_custom_call.1} parent=0
    #allocation2 [shape = 'u8[16384]{0}', space=vmem, size = 0x4000, scoped, tag = 'output window, operand 0']
    #allocation3 [shape = 's32[2]{0}', space=sflag, size = 0x8, scoped, tag = 'scoped memory for tpu_custom_call.1']
    %7 = vsyncpa [#allocation3], 0
    %s8 = scalar_lea.sflag [#allocation3], 1
    %9 = vsyncpa %s8, 0
    loop: start=0, step=1, limit=4
    $region2: #{tpu_custom_call.1} parent=1 // loop_pre_header
      _
    $region3: #{tpu_custom_call.1} parent=1 // loop_header
      %s11 = sphi 0, %s15
      %p12 = scmp.ge.s32.totalorder %s11, 4
      %s18 = sphi 0, %s30
      %s19 = sphi 0, %s26
      %s20 = sphi 0, %s18
      %s21 = sphi 0, %s19
      %s22 = sphi 0, %s20
      %s23 = sphi 0, %s21
      %s33 = sphi 0, %s35
      %s36 = sphi 0, %s33
      %s37 = sphi 0, %s36
      %s53 = sphi 0, %s37
      %s59 = sphi 0, %s61
      %s62 = sphi 0, %s59
      %s63 = sphi 0, %s62
      %s79 = sphi 0, %s63
      %s87 = sphi 0, %s89
      %s90 = sphi 0, %s87
      %s91 = sphi 0, %s90
      %s107 = sphi 0, %s91
    $region4: #{tpu_custom_call.1} parent=1 // loop_header_branch
      %14 = sbr.rel (%p12) target = $region8
    $region5: #{tpu_custom_call.1} parent=1 // loop_body
      %s16 = ssub.s32 %s11, 1
      %s17 = ssub.s32 %s11, 2
      %s24 = sadd.s32 1, %s19
      %p25 = scmp.ge.s32.totalorder %s24, 2
      %s26 = scalar_select %p25, 0, %s24
      %s27 = sadd.s32 1, %s18
      %s28 = scalar_select %p25, %s27, %s18
      %p29 = scmp.ge.s32.totalorder %s28, 1
      %s30 = scalar_select %p29, 0, %s28
      %s31 = ssub.s32 %s19, %s26
      %p32 = scmp.eq.s32.totalorder %s31, 0
      %s34 = sadd.s32 %s33, 1
      %s35 = scalar_select %p32, %s33, %s34
      %p38 = pneg %p32
      %p39 = scmp.eq.s32.totalorder %s11, 1
      %p40 = por %p38, %p39
      %p41 = scmp.ne.s32.totalorder %s33, %s36
      %p42 = scmp.eq.s32.totalorder %s11, 0
      %p43 = por %p41, %p42
      %p44 = scmp.ne.s32.totalorder %s33, %s36
      %p45 = scmp.eq.s32.totalorder %s16, 1
      %p46 = por %p44, %p45
      %p47 = scmp.ne.s32.totalorder %s36, %s37
      %p48 = scmp.eq.s32.totalorder %s16, 0
      %p49 = por %p47, %p48
      %p50 = scmp.ne.s32.totalorder %s36, %s37
      %p51 = scmp.eq.s32.totalorder %s17, 1
      %p52 = por %p50, %p51
      %p54 = scmp.ne.s32.totalorder %s37, %s53
      %p55 = scmp.eq.s32.totalorder %s17, 0
      %p56 = por %p54, %p55
      %s57 = ssub.s32 %s18, %s30
      %p58 = scmp.eq.s32.totalorder %s57, 0
      %s60 = sadd.s32 %s59, 1
      %s61 = scalar_select %p58, %s59, %s60
      %p64 = pneg %p58
      %p65 = scmp.eq.s32.totalorder %s11, 1
      %p66 = por %p64, %p65
      %p67 = scmp.ne.s32.totalorder %s59, %s62
      %p68 = scmp.eq.s32.totalorder %s11, 0
      %p69 = por %p67, %p68
      %p70 = scmp.ne.s32.totalorder %s59, %s62
      %p71 = scmp.eq.s32.totalorder %s16, 1
      %p72 = por %p70, %p71
      %p73 = scmp.ne.s32.totalorder %s62, %s63
      %p74 = scmp.eq.s32.totalorder %s16, 0
      %p75 = por %p73, %p74
      %p76 = scmp.ne.s32.totalorder %s62, %s63
      %p77 = scmp.eq.s32.totalorder %s17, 1
      %p78 = por %p76, %p77
      %p80 = scmp.ne.s32.totalorder %s63, %s79
      %p81 = scmp.eq.s32.totalorder %s17, 0
      %p82 = por %p80, %p81
      %s83 = ssub.s32 %s19, %s26
      %s84 = ssub.s32 %s18, %s30
      %s85 = sor.u32 %s83, %s84
      %p86 = scmp.eq.s32.totalorder %s85, 0
      %s88 = sadd.s32 %s87, 1
      %s89 = scalar_select %p86, %s87, %s88
      %p92 = pneg %p86
      %p93 = scmp.eq.s32.totalorder %s11, 1
      %p94 = por %p92, %p93
      %p95 = scmp.ne.s32.totalorder %s87, %s90
      %p96 = scmp.eq.s32.totalorder %s11, 0
      %p97 = por %p95, %p96
      %p98 = scmp.ne.s32.totalorder %s87, %s90
      %p99 = scmp.eq.s32.totalorder %s16, 1
      %p100 = por %p98, %p99
      %p101 = scmp.ne.s32.totalorder %s90, %s91
      %p102 = scmp.eq.s32.totalorder %s16, 0
      %p103 = por %p101, %p102
      %p104 = scmp.ne.s32.totalorder %s90, %s91
      %p105 = scmp.eq.s32.totalorder %s17, 1
      %p106 = por %p104, %p105
      %p108 = scmp.ne.s32.totalorder %s91, %s107
      %p109 = scmp.eq.s32.totalorder %s17, 0
      %p110 = por %p108, %p109
      %p111 = scmp.le.s32.totalorder 1, %s11
      %p112 = scmp.lt.s32.totalorder %s11, 3
      %p113 = pnand %p111, %p112
      %p114 = pneg %p113
      // Predicated region
      $region9: #{tpu_custom_call.1} parent=5 // pred_check
        _
      $region10: #{tpu_custom_call.1} parent=5 // pred_check_branch
        %116 = sbr.rel (%p113) target = $region12
      $region11: #{tpu_custom_call.1} parent=5 // pred_region
        %s117 = ssub.s32 %s11, 1
        // Predicated region
        $region13: #{tpu_custom_call.1} parent=11 // pred_check
          %p118 = pneg %p75
        $region14: #{tpu_custom_call.1} parent=11 // pred_check_branch
          %120 = sbr.rel (%p118) target = $region16
        $region15: #{tpu_custom_call.1} parent=11 // pred_region
          %p121 = scmp.lt.s32.totalorder %s20, 0
          %s122 = scalar_select %p121, %s20, 0
          %s123 = smul.addr %s122, 8
          %s124 = scalar_lea.vmem %s1, %s123
        $region16: #{tpu_custom_call.1} parent=11 // pred_fallthru
          _
      $region12: #{tpu_custom_call.1} parent=5 // pred_fallthru
        _
      %p125 = scmp.lt.s32.totalorder %s11, 2
      // Predicated region
      $region17: #{tpu_custom_call.1} parent=5 // pred_check
        %p126 = pneg %p125
      $region18: #{tpu_custom_call.1} parent=5 // pred_check_branch
        %128 = sbr.rel (%p126) target = $region20
      $region19: #{tpu_custom_call.1} parent=5 // pred_region
        // Predicated region
        $region21: #{tpu_custom_call.1} parent=19 // pred_check
          %p129 = pneg %p43
        $region22: #{tpu_custom_call.1} parent=19 // pred_check_branch
          %131 = sbr.rel (%p129) target = $region24
        $region23: #{tpu_custom_call.1} parent=19 // pred_region
          %s132 = smul.u32 2, %s19
          %p133 = scmp.lt.s32.totalorder %s132, 3
          %s134 = scalar_select %p133, %s132, 3
          %s135 = smul.addr %s134, 8
          %s136 = scalar_lea.vmem %s0, %s135
          %s137 = smul.u32 2, %s19
        $region24: #{tpu_custom_call.1} parent=19 // pred_fallthru
          _
      $region20: #{tpu_custom_call.1} parent=5 // pred_fallthru
        _
      %p138 = scmp.le.s32.totalorder 1, %s11
      %p139 = scmp.lt.s32.totalorder %s11, 3
      %p140 = pnand %p138, %p139
      %p141 = pneg %p140
      // Predicated region
      $region25: #{tpu_custom_call.1} parent=5 // pred_check
        _
      $region26: #{tpu_custom_call.1} parent=5 // pred_check_branch
        %143 = sbr.rel (%p140) target = $region28
      $region27: #{tpu_custom_call.1} parent=5 // pred_region
        %s144 = ssub.s32 %s11, 1
        %s145 = smul.u32 2, %s21
        %p146 = scmp.lt.s32.totalorder %s145, 3
        %s147 = scalar_select %p146, %s145, 3
        %s148 = smul.addr %s147, 8
        %s149 = scalar_lea.vmem %s0, %s148
        %p150 = pneg %p49
        %p151 = pneg %p46
        %p152 = scmp.lt.s32.totalorder %s20, 0
        %s153 = scalar_select %p152, %s20, 0
        %s154 = smul.addr %s153, 8
        %s155 = scalar_lea.vmem %s1, %s154
        %p156 = pneg %p75
        %p157 = pneg %p72
        %p158 = pneg %p103
        %p159 = pneg %p100
        %s160 = sand.u32 %s90, 1
        %s161 = scalar_lea.sflag [#allocation3], %s160
        %s162 = sand.u32 %s90, 1
        %s163 = smul.addr %s162, 16
        %s164 = scalar_lea.vmem [#allocation2], %s163
        %s165 = smul.u32 2, %s21
        %p166 = scmp.lt.s32.totalorder %s165, 3
        %s167 = scalar_select %p166, %s165, 3
        %s168 = smul.addr %s167, 8
        %s169 = scalar_lea.vmem %s0, %s168
        %s170 = smul.u32 2, %s21
        %p171 = scmp.lt.s32.totalorder %s20, 0
        %s172 = scalar_select %p171, %s20, 0
        %s173 = smul.addr %s172, 8
        %s174 = scalar_lea.vmem %s1, %s173
        %s175 = smul.u32 2, %s21
        %v176 = vld [vmem:[%s169] sm:$0xff]
        %v177 = vld [vmem:[%s169 + $0x8] sm:$0xff]
        %v178 = vld [vmem:[%s174] sm:$0xff]
        %v179 = vld [vmem:[%s174 + $0x8] sm:$0xf]
        %vm180 = vcmask 97280
        %v182 = vsel %vm180, %v176, 0
        %v185 = vsel %vm180, %v177, 0
        %vm187 = vcmask 1043456
        %v189 = vsel %vm187, %v179, 0
        %191 = vmatpush.msra.mxu0 0.0
        %192 = vmatpush.msra.mxu0 0.0
        %193 = vmatpush.msra.mxu0 0.0
        %194 = vmatpush.msra.mxu0 0.0
        %195 = vmatpush.msra.mxu0 0.0
        %196 = vmatpush.msra.mxu0 0.0
        %197 = vmatpush.msra.mxu0 0.0
        %198 = vmatpush.msra.mxu0 0.0
        %199 = vmatpush.msra.mxu0 0.0
        %200 = vmatpush.msra.mxu0 0.0
        %201 = vmatpush.msra.mxu0 0.0
        %202 = vmatpush.msra.mxu0 0.0
        %203 = vmatpush.msra.mxu0 0.0
        %204 = vmatpush.msra.mxu0 0.0
        %205 = vmatpush.msra.mxu0 %v189
        %206 = vmatpush.msra.mxu0 %v178
        %207 = vmatmul.f32.gmra.mxu0 %v182
        %v208 = vpop.f32.mrf.mxu0
        %v209 = vadd.f32 0.0, %v208
        %210 = vmatmul.f32.gmra.mxu0 %v185
        %v211 = vpop.f32.mrf.mxu0
        %v212 = vadd.f32 0.0, %v211
        %213 = vdwg.mxu0
        %214 = vst [vmem:[%s164] sm:$0xff] %v209
        %215 = vst [vmem:[%s164 + $0x8] sm:$0xff] %v212
        %s216 = sand.u32 %s90, 1
        %s217 = scalar_lea.sflag [#allocation3], %s216
        %s218 = sand.u32 %s90, 1
        %s219 = smul.addr %s218, 16
        %s220 = scalar_lea.vmem [#allocation2], %s219
        // Predicated region
        $region29: #{tpu_custom_call.1} parent=27 // pred_check
          %p221 = pneg %p100
        $region30: #{tpu_custom_call.1} parent=27 // pred_check_branch
          %223 = sbr.rel (%p221) target = $region32
        $region31: #{tpu_custom_call.1} parent=27 // pred_region
          %s224 = smul.u32 2, %s21
          %226 = vsyncadd %s217, 0
          %s227 = sadd.s32 %s20, %s224
          %s228 = smul.addr %s227, 8
          %s229 = scalar_lea.hbm %s2, %s228
          %s230 = sshll.u32 %s220, 4
          %s231 = int_to_ptr.vmem [resolvable:$true] %s230
          %s232 = sshll.u32 %s229, 4
          %s233 = int_to_ptr.hbm [resolvable:$true] %s232
          %238 = dma.vmem_to_hbm [thread:$0]  %s231, 256, %s233, %s217, 128, 128, 8
        $region32: #{tpu_custom_call.1} parent=27 // pred_fallthru
          _
      $region28: #{tpu_custom_call.1} parent=5 // pred_fallthru
        _
      %p239 = scmp.le.s32.totalorder 2, %s11
      // Predicated region
      $region33: #{tpu_custom_call.1} parent=5 // pred_check
        %p240 = pneg %p239
      $region34: #{tpu_custom_call.1} parent=5 // pred_check_branch
        %242 = sbr.rel (%p240) target = $region36
      $region35: #{tpu_custom_call.1} parent=5 // pred_region
        %s243 = ssub.s32 %s11, 2
        // Predicated region
        $region37: #{tpu_custom_call.1} parent=35 // pred_check
          %p244 = pneg %p106
        $region38: #{tpu_custom_call.1} parent=35 // pred_check_branch
          %246 = sbr.rel (%p244) target = $region40
        $region39: #{tpu_custom_call.1} parent=35 // pred_region
          %s247 = sand.u32 %s91, 1
          %s248 = scalar_lea.sflag [#allocation3], %s247
          %s249 = sand.u32 %s91, 1
          %s250 = smul.addr %s249, 16
          %s251 = scalar_lea.vmem [#allocation2], %s250
          %253 = dma.done %s248, 256
        $region40: #{tpu_custom_call.1} parent=35 // pred_fallthru
          _
      $region36: #{tpu_custom_call.1} parent=5 // pred_fallthru
        _
    $region6: #{tpu_custom_call.1} parent=1 // loop_footer
      %s15 = sadd.s32 1, %s11
    $region7: #{tpu_custom_call.1} parent=1 // loop_footer_branch
      %10 = sbr.rel target = $region3
    $region8: #{tpu_custom_call.1} parent=1 // loop_exit
      _
    %254 = vsyncpa [#allocation3], 1
    %s255 = scalar_lea.sflag [#allocation3], 1
    %256 = vsyncpa %s255, 1

</llo_original>
